<compile_context>
chip_gen: v5e
topology: v5e:2x2
jax: 0.10.0
libtpu: 0.0.40
codegen_flags: <defaults>
</compile_context>

<pallas_src>
import functools

import jax
import jax.numpy as jnp
from jax.experimental import pallas as pl
from jax.experimental.pallas import tpu as pltpu

LEAKY_SLOPE = 0.01       # PyTorch nn.LeakyReLU default negative_slope
DEFAULT_TILE_B = 4096    # fits 32 MiB scoped VMEM with headroom on all chips


def _round_up(n, m):
    return ((n + m - 1) // m) * m


def _cdiv(a, b):
    return (a + b - 1) // b


def _domain_classifier_kernel(x_ref, w1_ref, b1_ref, w2_ref, b2_ref,
                              w3_ref, b3_ref, o_ref):
    # fc1 + LeakyReLU: bf16 operands on the MXU, f32 accumulate, f32 epilogue.
    x_bf = x_ref[...].astype(jnp.bfloat16)          # cheap VALU cast, hidden under DMA
    h = jnp.dot(x_bf, w1_ref[...], preferred_element_type=jnp.float32)
    h = h + b1_ref[...]
    h = jnp.where(h >= 0, h, LEAKY_SLOPE * h)

    # fc2 + LeakyReLU
    h = jnp.dot(h.astype(jnp.bfloat16), w2_ref[...],
                preferred_element_type=jnp.float32)
    h = h + b2_ref[...]
    h = jnp.where(h >= 0, h, LEAKY_SLOPE * h)

    # fc3 (out_features == 1): VPU multiply + lane reduction in f32.
    # w3 is a [1, 64] row that broadcasts over the batch tile.
    z = jnp.sum(h * w3_ref[...], axis=-1, keepdims=True) + b3_ref[...]

    # Exact sigmoid (exp lands on the EUP slot, which has slack here).
    o_ref[...] = (1.0 / (1.0 + jnp.exp(-z))).astype(o_ref.dtype)


@functools.partial(jax.jit, static_argnames=("tile_b",))
def domain_classifier_forward(x, params, *, tile_b=DEFAULT_TILE_B):
    """x: [B, 256] float32 -> [B, 1] float32 (== flattened featuremap)."""
    w1, b1, w2, b2, w3, b3 = params
    B, F = x.shape
    assert F == 256, F

    # Batch tile: multiple of 8 (sublane).  Guarantee >=2 grid steps whenever
    # B > 8 so both v7x TensorCores get work; cap at tile_b for VMEM.
    if B > 8:
        tb = min(tile_b, _round_up(_cdiv(B, 2), 8))
    else:
        tb = 8
    grid = _cdiv(B, tb)   # ragged last block handled by Pallas (writes dropped)

    # Weights to bf16 once (tiny arrays); biases / w3 / all activations stay f32.
    w1_bf = w1.astype(jnp.bfloat16)
    w2_bf = w2.astype(jnp.bfloat16)

    const = lambda i: (0, 0)   # resident block: DMA'd once, reused every step

    cost = pl.CostEstimate(
        flops=2 * B * (256 * 128 + 128 * 64 + 64),
        transcendentals=B,
        bytes_accessed=int(x.size) * x.dtype.itemsize + B * 4
        + sum(int(p.size) * p.dtype.itemsize for p in (w1, b1, w2, b2, w3, b3)),
    )

    out = pl.pallas_call(
        _domain_classifier_kernel,
        out_shape=jax.ShapeDtypeStruct((B, 1), jnp.float32),
        grid=(grid,),
        in_specs=[
            pl.BlockSpec((tb, 256), lambda i: (i, 0)),   # x: streamed per tile
            pl.BlockSpec((256, 128), const),             # w1 (bf16, resident)
            pl.BlockSpec((1, 128), const),               # b1 (f32)
            pl.BlockSpec((128, 64), const),              # w2 (bf16)
            pl.BlockSpec((1, 64), const),                # b2 (f32)
            pl.BlockSpec((1, 64), const),                # w3 row (f32)
            pl.BlockSpec((1, 1), const),                 # b3 (f32)
        ],
        out_specs=pl.BlockSpec((tb, 1), lambda i: (i, 0)),
        compiler_params=pltpu.CompilerParams(
            dimension_semantics=("parallel",),
            vmem_limit_bytes=32 * 1024 * 1024,
        ),
        cost_estimate=cost,
    )(x, w1_bf, b1, w2_bf, b2, w3, b3)

    return out


def init_params(key):
    """PyTorch-Linear-style init (uniform +/- 1/sqrt(fan_in)).
    w1/w2 stored as (in_features, out_features); w3 as the PyTorch (1, 64) row;
    biases as (1, out_features)."""
    specs = [(256, 128), (128, 64), (64, 1)]
    params = []
    for fan_in, fan_out in specs:
        kw, kb, key = jax.random.split(key, 3)
        bound = fan_in ** -0.5
        if fan_out == 1:
            w = jax.random.uniform(kw, (1, fan_in), jnp.float32, -bound, bound)
        else:
            w = jax.random.uniform(kw, (fan_in, fan_out), jnp.float32, -bound, bound)
        b = jax.random.uniform(kb, (1, fan_out), jnp.float32, -bound, bound)
        params.extend([w, b])
    return tuple(params)


def _reference(x, params):
    w1, b1, w2, b2, w3, b3 = params
    h = x @ w1 + b1
    h = jnp.where(h >= 0, h, LEAKY_SLOPE * h)
    h = h @ w2 + b2
    h = jnp.where(h >= 0, h, LEAKY_SLOPE * h)
    return jax.nn.sigmoid(h @ w3.T + b3)


if __name__ == "__main__":
    key = jax.random.PRNGKey(0)
    kx, kp = jax.random.split(key)
    params = init_params(kp)

    ok = True
    # B=8: single exact tile; B=10 / B=300: ragged last block + 2-step grid.
    for B in (8, 10, 300):
        x = jax.random.normal(jax.random.fold_in(kx, B), (B, 256), dtype=jnp.float32)
        out = domain_classifier_forward(x, params)
        jax.block_until_ready(out)

        ref = _reference(x, params)
        ok &= (out.shape == (B, 1))
        # bf16 matmul operands (f32 accumulate) vs f32 reference -> ~1e-3-level
        # differences on a [0,1]-bounded sigmoid output.
        ok &= bool(jnp.allclose(out, ref, atol=1e-2, rtol=1e-2))

    assert ok, "mismatch vs reference"
    print("KERNEL_OK")
</pallas_src>

<mosaic_0001>
module attributes {stable_mosaic.version = 11 : i64} {
  func.func @_domain_classifier_kernel(%arg0: i32, %arg1: memref<8x256xf32, #tpu.memory_space<vmem>>, %arg2: memref<256x128xbf16, #tpu.memory_space<vmem>>, %arg3: memref<1x128xf32, #tpu.memory_space<vmem>>, %arg4: memref<128x64xbf16, #tpu.memory_space<vmem>>, %arg5: memref<1x64xf32, #tpu.memory_space<vmem>>, %arg6: memref<1x64xf32, #tpu.memory_space<vmem>>, %arg7: memref<1x1xf32, #tpu.memory_space<vmem>>, %arg8: memref<8x1xf32, #tpu.memory_space<vmem>>) attributes {dimension_semantics = [#tpu.dimension_semantics<parallel>], iteration_bounds = array<i64: 1>, scalar_prefetch = 0 : i64, scratch_operands = 0 : i64, tpu.core_type = #tpu.core_type<tc>, window_params = [{transform_indices = @transform_0, window_bounds = array<i64: 8, 256>}, {pipeline_mode = #tpu.pipeline_mode<synchronous>, transform_indices = @transform_1, window_bounds = array<i64: 256, 128>}, {pipeline_mode = #tpu.pipeline_mode<synchronous>, transform_indices = @transform_2, window_bounds = array<i64: 1, 128>}, {pipeline_mode = #tpu.pipeline_mode<synchronous>, transform_indices = @transform_3, window_bounds = array<i64: 128, 64>}, {pipeline_mode = #tpu.pipeline_mode<synchronous>, transform_indices = @transform_4, window_bounds = array<i64: 1, 64>}, {pipeline_mode = #tpu.pipeline_mode<synchronous>, transform_indices = @transform_5, window_bounds = array<i64: 1, 64>}, {pipeline_mode = #tpu.pipeline_mode<synchronous>, transform_indices = @transform_6, window_bounds = array<i64: 1, 1>}, {transform_indices = @transform_7, window_bounds = array<i64: 8, 1>}]} {
    %c0 = arith.constant 0 : index
    %c0_0 = arith.constant 0 : index
    %0 = vector.load %arg1[%c0, %c0_0] : memref<8x256xf32, #tpu.memory_space<vmem>>, vector<8x256xf32>
    %1 = arith.truncf %0 : vector<8x256xf32> to vector<8x256xbf16>
    %c0_1 = arith.constant 0 : index
    %c0_2 = arith.constant 0 : index
    %2 = vector.load %arg2[%c0_1, %c0_2] : memref<256x128xbf16, #tpu.memory_space<vmem>>, vector<256x128xbf16>
    %cst = arith.constant dense<0.000000e+00> : vector<8x128xf32>
    %3 = tpu.matmul %1, %2, %cst {dimension_numbers = #tpu.dot_dimension_numbers<[1], [0], [0], [1], [0, 0, 1, 1], [], []>} : vector<8x256xbf16>, vector<256x128xbf16>, vector<8x128xf32> -> vector<8x128xf32>
    %c0_3 = arith.constant 0 : index
    %c0_4 = arith.constant 0 : index
    %4 = vector.load %arg3[%c0_3, %c0_4] : memref<1x128xf32, #tpu.memory_space<vmem>>, vector<1x128xf32>
    %5 = vector.broadcast %4 : vector<1x128xf32> to vector<8x128xf32>
    %6 = arith.addf %3, %5 : vector<8x128xf32>
    %cst_5 = arith.constant 0.000000e+00 : f32
    %7 = vector.broadcast %cst_5 : f32 to vector<8x128xf32>
    %8 = arith.cmpf oge, %6, %7 : vector<8x128xf32>
    %cst_6 = arith.constant 0.00999999977 : f32
    %9 = vector.broadcast %cst_6 : f32 to vector<8x128xf32>
    %10 = arith.mulf %9, %6 : vector<8x128xf32>
    %11 = arith.select %8, %6, %10 : vector<8x128xi1>, vector<8x128xf32>
    %12 = arith.truncf %11 : vector<8x128xf32> to vector<8x128xbf16>
    %c0_7 = arith.constant 0 : index
    %c0_8 = arith.constant 0 : index
    %13 = vector.load %arg4[%c0_7, %c0_8] : memref<128x64xbf16, #tpu.memory_space<vmem>>, vector<128x64xbf16>
    %cst_9 = arith.constant dense<0.000000e+00> : vector<8x64xf32>
    %14 = tpu.matmul %12, %13, %cst_9 {dimension_numbers = #tpu.dot_dimension_numbers<[1], [0], [0], [1], [0, 0, 1, 1], [], []>} : vector<8x128xbf16>, vector<128x64xbf16>, vector<8x64xf32> -> vector<8x64xf32>
    %c0_10 = arith.constant 0 : index
    %c0_11 = arith.constant 0 : index
    %15 = vector.load %arg5[%c0_10, %c0_11] : memref<1x64xf32, #tpu.memory_space<vmem>>, vector<1x64xf32>
    %16 = vector.broadcast %15 : vector<1x64xf32> to vector<8x64xf32>
    %17 = arith.addf %14, %16 : vector<8x64xf32>
    %cst_12 = arith.constant 0.000000e+00 : f32
    %18 = vector.broadcast %cst_12 : f32 to vector<8x64xf32>
    %19 = arith.cmpf oge, %17, %18 : vector<8x64xf32>
    %cst_13 = arith.constant 0.00999999977 : f32
    %20 = vector.broadcast %cst_13 : f32 to vector<8x64xf32>
    %21 = arith.mulf %20, %17 : vector<8x64xf32>
    %22 = arith.select %19, %17, %21 : vector<8x64xi1>, vector<8x64xf32>
    %c0_14 = arith.constant 0 : index
    %c0_15 = arith.constant 0 : index
    %23 = vector.load %arg6[%c0_14, %c0_15] : memref<1x64xf32, #tpu.memory_space<vmem>>, vector<1x64xf32>
    %24 = vector.broadcast %23 : vector<1x64xf32> to vector<8x64xf32>
    %25 = arith.mulf %22, %24 : vector<8x64xf32>
    %cst_16 = arith.constant dense<0.000000e+00> : vector<8xf32>
    %26 = vector.multi_reduction <add>, %25, %cst_16 [1] : vector<8x64xf32> to vector<8xf32>
    %27 = vector.shape_cast %26 : vector<8xf32> to vector<8x1xf32>
    %c0_17 = arith.constant 0 : index
    %c0_18 = arith.constant 0 : index
    %28 = vector.load %arg7[%c0_17, %c0_18] : memref<1x1xf32, #tpu.memory_space<vmem>>, vector<1x1xf32>
    %29 = vector.broadcast %28 : vector<1x1xf32> to vector<8x1xf32>
    %30 = arith.addf %27, %29 : vector<8x1xf32>
    %cst_19 = arith.constant 0.000000e+00 : f32
    %31 = vector.broadcast %cst_19 : f32 to vector<8x1xf32>
    %32 = arith.subf %31, %30 : vector<8x1xf32>
    %33 = math.exp %32 : vector<8x1xf32>
    %cst_20 = arith.constant 1.000000e+00 : f32
    %34 = vector.broadcast %cst_20 : f32 to vector<8x1xf32>
    %35 = arith.addf %34, %33 : vector<8x1xf32>
    %cst_21 = arith.constant 1.000000e+00 : f32
    %36 = vector.broadcast %cst_21 : f32 to vector<8x1xf32>
    %37 = arith.divf %36, %35 : vector<8x1xf32>
    %c0_22 = arith.constant 0 : index
    %c0_23 = arith.constant 0 : index
    %38 = vector.load %arg8[%c0_22, %c0_23] : memref<8x1xf32, #tpu.memory_space<vmem>>, vector<8x1xf32>
    tpu.vector_store %arg8[%c0_22, %c0_23], %37 {strides = array<i32>} : memref<8x1xf32, #tpu.memory_space<vmem>>, vector<8x1xf32>,
    return
  }
  func.func @transform_0(%arg0: i32) -> (i32, i32) {
    %c0_i32 = arith.constant 0 : i32
    %c0_i32_0 = arith.constant 0 : i32
    return %arg0, %c0_i32 : i32, i32
  }
  func.func @transform_1(%arg0: i32) -> (i32, i32) {
    %c0_i32 = arith.constant 0 : i32
    %c0_i32_0 = arith.constant 0 : i32
    %c0_i32_1 = arith.constant 0 : i32
    return %c0_i32, %c0_i32_0 : i32, i32
  }
  func.func @transform_2(%arg0: i32) -> (i32, i32) {
    %c0_i32 = arith.constant 0 : i32
    %c0_i32_0 = arith.constant 0 : i32
    %c0_i32_1 = arith.constant 0 : i32
    return %c0_i32, %c0_i32_0 : i32, i32
  }
  func.func @transform_3(%arg0: i32) -> (i32, i32) {
    %c0_i32 = arith.constant 0 : i32
    %c0_i32_0 = arith.constant 0 : i32
    %c0_i32_1 = arith.constant 0 : i32
    return %c0_i32, %c0_i32_0 : i32, i32
  }
  func.func @transform_4(%arg0: i32) -> (i32, i32) {
    %c0_i32 = arith.constant 0 : i32
    %c0_i32_0 = arith.constant 0 : i32
    %c0_i32_1 = arith.constant 0 : i32
    return %c0_i32, %c0_i32_0 : i32, i32
  }
  func.func @transform_5(%arg0: i32) -> (i32, i32) {
    %c0_i32 = arith.constant 0 : i32
    %c0_i32_0 = arith.constant 0 : i32
    %c0_i32_1 = arith.constant 0 : i32
    return %c0_i32, %c0_i32_0 : i32, i32
  }
  func.func @transform_6(%arg0: i32) -> (i32, i32) {
    %c0_i32 = arith.constant 0 : i32
    %c0_i32_0 = arith.constant 0 : i32
    %c0_i32_1 = arith.constant 0 : i32
    return %c0_i32, %c0_i32_0 : i32, i32
  }
  func.func @transform_7(%arg0: i32) -> (i32, i32) {
    %c0_i32 = arith.constant 0 : i32
    %c0_i32_0 = arith.constant 0 : i32
    return %arg0, %c0_i32 : i32, i32
  }
}

</mosaic_0001>

<llo_original>
// kernel: domain_classifier_forward.1
$region0: #{domain_classifier_forward.1}
  #allocation0 [shape = 'u32[]', space=smem, size = 0x4, offset = 0x4, fixed_abs, tag = 'smem constant byte address 0x4 - core index']
  #allocation1 [shape = 'u32[72,128]{1,0:T(1,128)}', space=vmem, size = 0x9000, scoped, tag = 'internal scratch']
  #allocation2 [shape = 'f32[1,1]{1,0:T(1,128)S(1)}', space=vmem, size = 0x200, scoped, tag = 'scoped memory for domain_classifier_forward.1']
  %s0 = inlined_call_operand.vmem [shape: f32[8,256], index: 0, kind: input, shape index: {}]
  %s1 = inlined_call_operand.vmem [shape: bf16[256,128], index: 1, kind: input, shape index: {}]
  %s2 = inlined_call_operand.vmem [shape: f32[1,128], index: 2, kind: input, shape index: {}]
  %s3 = inlined_call_operand.vmem [shape: bf16[128,64], index: 3, kind: input, shape index: {}]
  %s4 = inlined_call_operand.vmem [shape: f32[1,64], index: 4, kind: input, shape index: {}]
  %s5 = inlined_call_operand.vmem [shape: f32[1,64], index: 5, kind: input, shape index: {}]
  %s6 = inlined_call_operand.<no memory space> [shape: f32[1,1], index: 6, kind: input, shape index: {}]
  %s7 = inlined_call_operand.vmem [shape: f32[8,1], index: 7, kind: output, shape index: {}]
  %s8 = sld [smem:[#allocation0]]
  $region38: #{domain_classifier_forward.1} parent=0
    _
  %s10 = ssub.s32 1, %s8
  %s11 = scalar_select 0, %s10, %s8
  %v12 = vstv %s6
  %13 = vst [vmem:[#allocation2] sm:$0x1] %v12
  // Predicated region
  $region2: #{domain_classifier_forward.1} parent=0 // pred_check
    _
  $region3: #{domain_classifier_forward.1} parent=0 // pred_check_branch
    %15 = sbr.rel (0) target = $region5
  $region4: #{domain_classifier_forward.1} parent=0 // pred_region
    _
  $region5: #{domain_classifier_forward.1} parent=0 // pred_fallthru
    _
  // Predicated region
  $region6: #{domain_classifier_forward.1} parent=0 // pred_check
    _
  $region7: #{domain_classifier_forward.1} parent=0 // pred_check_branch
    %17 = sbr.rel (0) target = $region9
  $region8: #{domain_classifier_forward.1} parent=0 // pred_region
    _
  $region9: #{domain_classifier_forward.1} parent=0 // pred_fallthru
    _
  // Predicated region
  $region10: #{domain_classifier_forward.1} parent=0 // pred_check
    _
  $region11: #{domain_classifier_forward.1} parent=0 // pred_check_branch
    %19 = sbr.rel (0) target = $region13
  $region12: #{domain_classifier_forward.1} parent=0 // pred_region
    _
  $region13: #{domain_classifier_forward.1} parent=0 // pred_fallthru
    _
  // Predicated region
  $region14: #{domain_classifier_forward.1} parent=0 // pred_check
    _
  $region15: #{domain_classifier_forward.1} parent=0 // pred_check_branch
    %21 = sbr.rel (0) target = $region17
  $region16: #{domain_classifier_forward.1} parent=0 // pred_region
    _
  $region17: #{domain_classifier_forward.1} parent=0 // pred_fallthru
    _
  // Predicated region
  $region18: #{domain_classifier_forward.1} parent=0 // pred_check
    _
  $region19: #{domain_classifier_forward.1} parent=0 // pred_check_branch
    %23 = sbr.rel (0) target = $region21
  $region20: #{domain_classifier_forward.1} parent=0 // pred_region
    _
  $region21: #{domain_classifier_forward.1} parent=0 // pred_fallthru
    _
  // Predicated region
  $region22: #{domain_classifier_forward.1} parent=0 // pred_check
    _
  $region23: #{domain_classifier_forward.1} parent=0 // pred_check_branch
    %25 = sbr.rel (0) target = $region25
  $region24: #{domain_classifier_forward.1} parent=0 // pred_region
    _
  $region25: #{domain_classifier_forward.1} parent=0 // pred_fallthru
    _
  // Predicated region
  $region26: #{domain_classifier_forward.1} parent=0 // pred_check
    _
  $region27: #{domain_classifier_forward.1} parent=0 // pred_check_branch
    %27 = sbr.rel (0) target = $region29
  $region28: #{domain_classifier_forward.1} parent=0 // pred_region
    _
  $region29: #{domain_classifier_forward.1} parent=0 // pred_fallthru
    _
  %v28 = vld [vmem:[%s0] sm:$0xff]
  %v29 = vld [vmem:[%s0 + $0x8] sm:$0xff]
  %v30 = vpack.c.bf16 %v28, %v28
  %v31 = vpack.c.bf16 %v29, %v29
  %v32 = vld [vmem:[%s1] sm:$0xf]
  %v33 = vld [vmem:[%s1 + $0x4] sm:$0xf]
  %v34 = vld [vmem:[%s1 + $0x8] sm:$0xf]
  %v35 = vld [vmem:[%s1 + $0xc] sm:$0xf]
  %v36 = vld [vmem:[%s1 + $0x10] sm:$0xf]
  %v37 = vld [vmem:[%s1 + $0x14] sm:$0xf]
  %v38 = vld [vmem:[%s1 + $0x18] sm:$0xf]
  %v39 = vld [vmem:[%s1 + $0x1c] sm:$0xf]
  %v40 = vld [vmem:[%s1 + $0x20] sm:$0xf]
  %v41 = vld [vmem:[%s1 + $0x24] sm:$0xf]
  %v42 = vld [vmem:[%s1 + $0x28] sm:$0xf]
  %v43 = vld [vmem:[%s1 + $0x2c] sm:$0xf]
  %v44 = vld [vmem:[%s1 + $0x30] sm:$0xf]
  %v45 = vld [vmem:[%s1 + $0x34] sm:$0xf]
  %v46 = vld [vmem:[%s1 + $0x38] sm:$0xf]
  %v47 = vld [vmem:[%s1 + $0x3c] sm:$0xf]
  %v48 = vld [vmem:[%s1 + $0x40] sm:$0xf]
  %v49 = vld [vmem:[%s1 + $0x44] sm:$0xf]
  %v50 = vld [vmem:[%s1 + $0x48] sm:$0xf]
  %v51 = vld [vmem:[%s1 + $0x4c] sm:$0xf]
  %v52 = vld [vmem:[%s1 + $0x50] sm:$0xf]
  %v53 = vld [vmem:[%s1 + $0x54] sm:$0xf]
  %v54 = vld [vmem:[%s1 + $0x58] sm:$0xf]
  %v55 = vld [vmem:[%s1 + $0x5c] sm:$0xf]
  %v56 = vld [vmem:[%s1 + $0x60] sm:$0xf]
  %v57 = vld [vmem:[%s1 + $0x64] sm:$0xf]
  %v58 = vld [vmem:[%s1 + $0x68] sm:$0xf]
  %v59 = vld [vmem:[%s1 + $0x6c] sm:$0xf]
  %v60 = vld [vmem:[%s1 + $0x70] sm:$0xf]
  %v61 = vld [vmem:[%s1 + $0x74] sm:$0xf]
  %v62 = vld [vmem:[%s1 + $0x78] sm:$0xf]
  %v63 = vld [vmem:[%s1 + $0x7c] sm:$0xf]
  %v64 = vld [vmem:[%s2] sm:$0x1]
  %v66 = vperm.slane %v64, 0
  %v100 = vunpack.c.l.b16 %v32
  %v101 = vunpack.c.l.b16 %v33
  %v102 = vunpack.c.l.b16 %v34
  %v103 = vunpack.c.l.b16 %v35
  %v104 = vunpack.c.l.b16 %v36
  %v105 = vunpack.c.l.b16 %v37
  %v106 = vunpack.c.l.b16 %v38
  %v107 = vunpack.c.l.b16 %v39
  %v108 = vunpack.c.l.b16 %v40
  %v109 = vunpack.c.l.b16 %v41
  %v110 = vunpack.c.l.b16 %v42
  %v111 = vunpack.c.l.b16 %v43
  %v112 = vunpack.c.l.b16 %v44
  %v113 = vunpack.c.l.b16 %v45
  %v114 = vunpack.c.l.b16 %v46
  %v115 = vunpack.c.l.b16 %v47
  %v116 = vunpack.c.l.b16 %v48
  %v117 = vunpack.c.l.b16 %v49
  %v118 = vunpack.c.l.b16 %v50
  %v119 = vunpack.c.l.b16 %v51
  %v120 = vunpack.c.l.b16 %v52
  %v121 = vunpack.c.l.b16 %v53
  %v122 = vunpack.c.l.b16 %v54
  %v123 = vunpack.c.l.b16 %v55
  %v124 = vunpack.c.l.b16 %v56
  %v125 = vunpack.c.l.b16 %v57
  %v126 = vunpack.c.l.b16 %v58
  %v127 = vunpack.c.l.b16 %v59
  %v128 = vunpack.c.l.b16 %v60
  %v129 = vunpack.c.l.b16 %v61
  %v130 = vunpack.c.l.b16 %v62
  %v131 = vunpack.c.l.b16 %v63
  %v132 = vpack.c.b16 %v101, %v100
  %v133 = vpack.c.b16 %v103, %v102
  %v134 = vpack.c.b16 %v105, %v104
  %v135 = vpack.c.b16 %v107, %v106
  %v136 = vpack.c.b16 %v109, %v108
  %v137 = vpack.c.b16 %v111, %v110
  %v138 = vpack.c.b16 %v113, %v112
  %v139 = vpack.c.b16 %v115, %v114
  %v140 = vpack.c.b16 %v117, %v116
  %v141 = vpack.c.b16 %v119, %v118
  %v142 = vpack.c.b16 %v121, %v120
  %v143 = vpack.c.b16 %v123, %v122
  %v144 = vpack.c.b16 %v125, %v124
  %v145 = vpack.c.b16 %v127, %v126
  %v146 = vpack.c.b16 %v129, %v128
  %v147 = vpack.c.b16 %v131, %v130
  %164 = vmatpush.bf16.msra.mxu0 %v139
  %165 = vmatpush.bf16.msra.mxu0 %v138
  %166 = vmatpush.bf16.msra.mxu0 %v137
  %167 = vmatpush.bf16.msra.mxu0 %v136
  %168 = vmatpush.bf16.msra.mxu0 %v135
  %169 = vmatpush.bf16.msra.mxu0 %v134
  %170 = vmatpush.bf16.msra.mxu0 %v133
  %171 = vmatpush.bf16.msra.mxu0 %v132
  %172 = vmatmul.bf16.gmra.mxu0 %v30
  %v173 = vpop.f32.mrf.mxu0
  %v174 = vadd.f32 %v66, %v173
  %v175 = vpop.f32.mrf.mxu0
  %176 = vdwg.mxu0
  %177 = vmatpush.bf16.msra.mxu0 %v147
  %178 = vmatpush.bf16.msra.mxu0 %v146
  %179 = vmatpush.bf16.msra.mxu0 %v145
  %180 = vmatpush.bf16.msra.mxu0 %v144
  %181 = vmatpush.bf16.msra.mxu0 %v143
  %182 = vmatpush.bf16.msra.mxu0 %v142
  %183 = vmatpush.bf16.msra.mxu0 %v141
  %184 = vmatpush.bf16.msra.mxu0 %v140
  %185 = vmatmul.bf16.gmra.mxu0 %v31
  %v186 = vpop.f32.mrf.mxu0
  %v187 = vadd.f32 %v174, %v186
  %v188 = vpop.f32.mrf.mxu0
  %189 = vdwg.mxu0
  %vm190 = vcmp.ge.f32.partialorder %v187, 0.0
  %v191 = vmul.f32 %v187, 0.01
  %v192 = vsel %vm190, %v187, %v191
  %v193 = vpack.c.bf16 %v192, %v192
  %v194 = vld [vmem:[%s3] sm:$0xf]
  %v195 = vld [vmem:[%s3 + $0x4] sm:$0xf]
  %v196 = vld [vmem:[%s3 + $0x8] sm:$0xf]
  %v197 = vld [vmem:[%s3 + $0xc] sm:$0xf]
  %v198 = vld [vmem:[%s3 + $0x10] sm:$0xf]
  %v199 = vld [vmem:[%s3 + $0x14] sm:$0xf]
  %v200 = vld [vmem:[%s3 + $0x18] sm:$0xf]
  %v201 = vld [vmem:[%s3 + $0x1c] sm:$0xf]
  %v202 = vld [vmem:[%s3 + $0x20] sm:$0xf]
  %v203 = vld [vmem:[%s3 + $0x24] sm:$0xf]
  %v204 = vld [vmem:[%s3 + $0x28] sm:$0xf]
  %v205 = vld [vmem:[%s3 + $0x2c] sm:$0xf]
  %v206 = vld [vmem:[%s3 + $0x30] sm:$0xf]
  %v207 = vld [vmem:[%s3 + $0x34] sm:$0xf]
  %v208 = vld [vmem:[%s3 + $0x38] sm:$0xf]
  %v209 = vld [vmem:[%s3 + $0x3c] sm:$0xf]
  %v210 = vld [vmem:[%s4] sm:$0x1]
  %v212 = vperm.slane %v210, 0
  %v230 = vunpack.c.l.b16 %v194
  %v231 = vunpack.c.l.b16 %v195
  %v232 = vunpack.c.l.b16 %v196
  %v233 = vunpack.c.l.b16 %v197
  %v234 = vunpack.c.l.b16 %v198
  %v235 = vunpack.c.l.b16 %v199
  %v236 = vunpack.c.l.b16 %v200
  %v237 = vunpack.c.l.b16 %v201
  %v238 = vunpack.c.l.b16 %v202
  %v239 = vunpack.c.l.b16 %v203
  %v240 = vunpack.c.l.b16 %v204
  %v241 = vunpack.c.l.b16 %v205
  %v242 = vunpack.c.l.b16 %v206
  %v243 = vunpack.c.l.b16 %v207
  %v244 = vunpack.c.l.b16 %v208
  %v245 = vunpack.c.l.b16 %v209
  %v246 = vpack.c.b16 %v231, %v230
  %v247 = vpack.c.b16 %v233, %v232
  %v248 = vpack.c.b16 %v235, %v234
  %v249 = vpack.c.b16 %v237, %v236
  %v250 = vpack.c.b16 %v239, %v238
  %v251 = vpack.c.b16 %v241, %v240
  %v252 = vpack.c.b16 %v243, %v242
  %v253 = vpack.c.b16 %v245, %v244
  %262 = vmatpush.bf16.msra.mxu0 %v253
  %263 = vmatpush.bf16.msra.mxu0 %v252
  %264 = vmatpush.bf16.msra.mxu0 %v251
  %265 = vmatpush.bf16.msra.mxu0 %v250
  %266 = vmatpush.bf16.msra.mxu0 %v249
  %267 = vmatpush.bf16.msra.mxu0 %v248
  %268 = vmatpush.bf16.msra.mxu0 %v247
  %269 = vmatpush.bf16.msra.mxu0 %v246
  %270 = vmatmul.bf16.gmra.mxu0 %v193
  %v271 = vpop.f32.mrf.mxu0
  %v272 = vadd.f32 %v212, %v271
  %v273 = vpop.f32.mrf.mxu0
  %274 = vdwg.mxu0
  %vm275 = vcmp.ge.f32.partialorder %v272, 0.0
  %v276 = vmul.f32 %v272, 0.01
  %v277 = vsel %vm275, %v272, %v276
  %v278 = vld [vmem:[%s5] sm:$0x1]
  %v280 = vperm.slane %v278, 0
  %v282 = vmul.f32 %v277, %v280
  %vm283 = vcmask 523264
  %v284 = vsel %vm283, %v282, 0.0
  %285 = vadd.xlane.f32.xlu0 %v284
  %v286 = vpop.xlane.xlu0 %285
  %v287 = vld [vmem:[#allocation2] sm:$0x1]
  %v289 = vperm.slane %v287, 0
  %v291 = vadd.f32 %v286, %v289
  %v292 = vsub.f32 0.0, %v291
  %v293 = vmul.f32 %v292, 1.442695
  %v294 = vpow.pop %v293
  %v295 = vadd.f32 %v294, 1.0
  %v296 = vrcp.pop %v295
  %v297 = vmul.f32 %v295, %v296
  %v298 = vsub.f32 1.0, %v297
  %v299 = vmul.f32 %v296, %v298
  %v300 = vadd.f32 %v296, %v299
  %vm301 = vweird.f32 %v295
  %vm302 = vweird.f32 %v296
  %vm303 = vmor %vm301, %vm302
  %v304 = vsel %vm303, %v296, %v300
  %v305 = vand.u32 2147483647, %v295
  %vm306 = vcmp.eq.f32.partialorder %v305, 8.507059e+37
  %v307 = vand.u32 %v295, 2147483648
  %v308 = vor.u32 1.1754944e-38, %v307
  %v309 = vsel %vm306, %v308, %v304
  %v310 = vmul.f32 1.0, %v309
  %vm311 = vcmask 7168
  %312 = vst.msk [vmem:[%s7] sm:$0xff] %vm311, %v310
  // Predicated region
  $region30: #{domain_classifier_forward.1} parent=0 // pred_check
    _
  $region31: #{domain_classifier_forward.1} parent=0 // pred_check_branch
    %314 = sbr.rel (0) target = $region33
  $region32: #{domain_classifier_forward.1} parent=0 // pred_region
    _
  $region33: #{domain_classifier_forward.1} parent=0 // pred_fallthru
    _
  // Predicated region
  $region34: #{domain_classifier_forward.1} parent=0 // pred_check
    _
  $region35: #{domain_classifier_forward.1} parent=0 // pred_check_branch
    %316 = sbr.rel (0) target = $region37
  $region36: #{domain_classifier_forward.1} parent=0 // pred_region
    _
  $region37: #{domain_classifier_forward.1} parent=0 // pred_fallthru
    _

</llo_original>
